<compile_context>
chip_gen: v5e
topology: v5e:2x2
jax: 0.10.0
libtpu: 0.0.40
codegen_flags: <defaults>
</compile_context>

<pallas_src>
import functools

import jax
import jax.numpy as jnp
import numpy as np
from jax.experimental import pallas as pl
from jax.experimental.pallas import tpu as pltpu


# ------------------------------ Pallas kernel -------------------------------

def lstm_wavefront_kernel(x_ref, wwide_ref, bwide_ref, wfused_ref, wfc_ref,
                          bfc_ref, out_ref, *, T, B, H, L):
    """Wavefront-fused multi-layer LSTM + final Linear on the last timestep.

    x_ref     : (B*T, I)   input, rows in natural batch-major (b*T + t) order
    wwide_ref : (I, L*4H)  layer-0 W_ih^T scattered into the fused gate columns
    bwide_ref : (1, L*4H)  all layers' (b_ih + b_hh) in the fused gate columns
    wfused_ref: (L*H, L*4H) block matrix of all recurrent + inter-layer weights
    wfc_ref   : (H, O)     fc weight^T
    bfc_ref   : (1, O)     fc bias
    out_ref   : (B, O)
    Fused gate layout: [i_0..i_{L-1} | f_0..f_{L-1} | g_0..g_{L-1} | o_0..o_{L-1}],
    matching the fused state layout [h_0 | h_1 | ... | h_{L-1}].
    """
    S = L * H          # fused state width
    # Hoisted, time-invariant layer-0 input projection + all biases.
    # One big MXU pass, completely off the serial recurrence.
    xproj = (jnp.dot(x_ref[...], wwide_ref[...],
                     preferred_element_type=jnp.float32)
             + bwide_ref[...])                       # (B*T, 4S)

    w_fused = wfused_ref[...]                        # (S, 4S), time-invariant
    # TODO(synk): on v6e/v7x this time-invariant RHS could be staged once in
    # MXU weight registers (pltpu.matmul_push_rhs / matmul_acc_lhs /
    # matmul_pop) to make the recurrence weight-stationary; kept as jnp.dot
    # for robustness.

    h_all = jnp.zeros((B, S), jnp.float32)           # [h_0 | h_1 | ...]
    c_all = jnp.zeros((B, S), jnp.float32)

    n_waves = T + L - 1
    for s in range(n_waves):                         # fully unrolled (T, L static & tiny)
        t = min(s, T - 1)   # layer-0 timestep (clamped; clamped waves' layer-0 slot is dead)

        # (B, 4S) addend = layer-0 x_t projection + every layer's bias.
        # Static row picks from xproj: independent of the recurrence, so the
        # scheduler hoists them off the serial chain.
        x_add = jnp.concatenate(
            [xproj[b * T + t:b * T + t + 1, :] for b in range(B)], axis=0)

        # ONE fused block matmul per wave: all layers' recurrent projections
        # and the inter-layer input projections together.
        gates = x_add + jnp.dot(h_all, w_fused,
                                preferred_element_type=jnp.float32)   # (B, 4S)

        # Full-width nonlinearities: 1 sigmoid + 1 tanh over the whole gate
        # tile (+ tanh(c) below) = 3 EUP pushes per wave.  Exact tanh-form
        # sigmoid guarantees a single-EUP-op lowering.
        sig = 0.5 * jnp.tanh(0.5 * gates) + 0.5
        th = jnp.tanh(gates)

        i_all = sig[:, 0 * S:1 * S]
        f_all = sig[:, 1 * S:2 * S]
        g_all = th[:, 2 * S:3 * S]
        o_all = sig[:, 3 * S:4 * S]

        # Fused cell update for all layers at once (PyTorch i,f,g,o semantics).
        c_all = f_all * c_all + i_all * g_all
        h_all = o_all * jnp.tanh(c_all)

        if s < L - 1:
            # Wavefront start boundary: layers that have not reached t=0 yet
            # must keep h = c = 0 (the PyTorch zero initial state).
            lane = jax.lax.broadcasted_iota(jnp.int32, (1, S), 1)
            keep = (lane < (s + 1) * H).astype(jnp.float32)
            h_all = h_all * keep
            c_all = c_all * keep

    # FC head on the top layer's last-timestep hidden state.
    h_last = h_all[:, (L - 1) * H:L * H]             # (B, H)
    out_ref[...] = (jnp.dot(h_last, wfc_ref[...],
                            preferred_element_type=jnp.float32)
                    + bfc_ref[...]).astype(out_ref.dtype)


# --------------------------------- wrapper -----------------------------------

@jax.jit
def lstm_forecast_forward(x, packed):
    """x: (B, T, input_size) batch-first, like the PyTorch module (eval / dropout=0)."""
    B, T, I = x.shape
    H = packed["w_fc_T"].shape[0]
    O = packed["w_fc_T"].shape[1]
    S = packed["w_fused"].shape[0]
    L = S // H

    # Natural-layout input: (B, T, I) -> (B*T, I) is a contiguous merge of the
    # leading dims (an XLA bitcast) -- no host transpose / pad / HBM round trip.
    x2d = x.reshape(B * T, I).astype(jnp.float32)

    vmem = lambda: pl.BlockSpec(memory_space=pltpu.MemorySpace.VMEM)
    # Single grid-less pallas_call; all operands resident in VMEM (tens of KiB,
    # far below the 32 MiB scoped / 64 MiB physical VMEM even on v7x).
    # TODO(synk): if B ever grows >= 16 on v7x, add a batch grid axis with
    # dimension_semantics=("parallel",) so the second TensorCore takes half.
    return pl.pallas_call(
        functools.partial(lstm_wavefront_kernel, T=T, B=B, H=H, L=L),
        out_shape=jax.ShapeDtypeStruct((B, O), jnp.float32),
        in_specs=[vmem() for _ in range(6)],
        out_specs=vmem(),
    )(x2d, packed["w_wide"], packed["bias_wide"], packed["w_fused"],
      packed["w_fc_T"], packed["b_fc"])


# ------------------------------ parameter init -------------------------------

def init_raw_params(key, input_size, hidden_size, num_layers, output_size):
    """Torch-style uniform(-1/sqrt(H), 1/sqrt(H)) init; raw (untransposed) params."""
    bound = 1.0 / np.sqrt(hidden_size)
    layers = []
    for layer in range(num_layers):
        in_sz = input_size if layer == 0 else hidden_size
        key, k1, k2, k3, k4 = jax.random.split(key, 5)
        w_ih = jax.random.uniform(k1, (4 * hidden_size, in_sz), jnp.float32, -bound, bound)
        w_hh = jax.random.uniform(k2, (4 * hidden_size, hidden_size), jnp.float32, -bound, bound)
        b_ih = jax.random.uniform(k3, (4 * hidden_size,), jnp.float32, -bound, bound)
        b_hh = jax.random.uniform(k4, (4 * hidden_size,), jnp.float32, -bound, bound)
        layers.append((w_ih, w_hh, b_ih, b_hh))
    key, k5, k6 = jax.random.split(key, 3)
    w_fc = jax.random.uniform(k5, (output_size, hidden_size), jnp.float32, -bound, bound)
    b_fc = jax.random.uniform(k6, (output_size,), jnp.float32, -bound, bound)
    return {"layers": layers, "w_fc": w_fc, "b_fc": b_fc}


def pack_params(raw, input_size):
    """Build the fused, column-permuted weight layout used by the wavefront kernel.

    Fused gate columns: [i_0..i_{L-1} | f_0..f_{L-1} | g_0..g_{L-1} | o_0..o_{L-1}],
    each sub-block H wide.  Fused state rows: [h_0 | h_1 | ... | h_{L-1}].
      w_wide    (I,  4S): layer-0 W_ih^T scattered into layer-0 gate columns.
      bias_wide (1,  4S): every layer's (b_ih + b_hh) at its gate columns.
      w_fused   (S,  4S): rows l*H..(l+1)*H carry W_hh_l^T into layer-l columns
                          and W_ih_{l+1}^T into layer-(l+1) columns.
    """
    layers = raw["layers"]
    L = len(layers)
    H = np.asarray(layers[0][1]).shape[1]   # w_hh: (4H, H)
    S = L * H
    G = 4 * S
    I = input_size

    def col(gate, layer):
        return gate * S + layer * H

    w_wide = np.zeros((I, G), np.float32)
    bias_wide = np.zeros((1, G), np.float32)
    w_fused = np.zeros((S, G), np.float32)

    for l, (w_ih, w_hh, b_ih, b_hh) in enumerate(layers):
        w_ih_T = np.asarray(w_ih).T          # (in, 4H), PyTorch gate order [i f g o]
        w_hh_T = np.asarray(w_hh).T          # (H, 4H)
        b = np.asarray(b_ih) + np.asarray(b_hh)
        for g in range(4):
            c0 = col(g, l)
            bias_wide[0, c0:c0 + H] = b[g * H:(g + 1) * H]
            w_fused[l * H:(l + 1) * H, c0:c0 + H] = w_hh_T[:, g * H:(g + 1) * H]
            if l == 0:
                w_wide[:, c0:c0 + H] = w_ih_T[:, g * H:(g + 1) * H]
            else:
                w_fused[(l - 1) * H:l * H, c0:c0 + H] = w_ih_T[:, g * H:(g + 1) * H]

    return {
        "w_wide": jnp.asarray(w_wide),
        "bias_wide": jnp.asarray(bias_wide),
        "w_fused": jnp.asarray(w_fused),
        "w_fc_T": jnp.asarray(np.asarray(raw["w_fc"]).T),      # (H, O)
        "b_fc": jnp.asarray(np.asarray(raw["b_fc"]).reshape(1, -1)),
    }


# ------------------------------- pure-JAX ref ---------------------------------

def reference_forward(x, raw):
    h_seq = jnp.transpose(x, (1, 0, 2)).astype(jnp.float32)   # (T, B, I)
    for (w_ih, w_hh, b_ih, b_hh) in raw["layers"]:
        H = w_hh.shape[1]
        B = h_seq.shape[1]
        h0 = jnp.zeros((B, H), jnp.float32)
        c0 = jnp.zeros((B, H), jnp.float32)

        def step(carry, x_t, w_ih=w_ih, w_hh=w_hh, b=b_ih + b_hh, H=H):
            h, c = carry
            gates = x_t @ w_ih.T + h @ w_hh.T + b
            i_g = jax.nn.sigmoid(gates[:, 0 * H:1 * H])
            f_g = jax.nn.sigmoid(gates[:, 1 * H:2 * H])
            g_g = jnp.tanh(gates[:, 2 * H:3 * H])
            o_g = jax.nn.sigmoid(gates[:, 3 * H:4 * H])
            c_new = f_g * c + i_g * g_g
            h_new = o_g * jnp.tanh(c_new)
            return (h_new, c_new), h_new

        (_, _), h_seq = jax.lax.scan(step, (h0, c0), h_seq)
    return h_seq[-1] @ raw["w_fc"].T + raw["b_fc"]


# ----------------------------------- main -------------------------------------

if __name__ == "__main__":
    # LSTMForecast(input_size=4, hidden_size=32, num_layers=2, output_size=4)
    B, T, I, H, L, O = 2, 8, 4, 32, 2, 4

    key = jax.random.PRNGKey(0)
    key, kx, kp = jax.random.split(key, 3)
    x = jax.random.normal(kx, (B, T, I), jnp.float32)
    raw = init_raw_params(kp, I, H, L, O)
    packed = pack_params(raw, I)
    # TODO(synk): inter-layer dropout (dropout_prob > 0, training mode) is not
    # applied; matches eval / dropout=0 semantics of the reference module.

    out = jax.block_until_ready(lstm_forecast_forward(x, packed))

    ref = reference_forward(x, raw)
    np.testing.assert_allclose(np.asarray(out), np.asarray(ref), rtol=1e-5, atol=1e-5)
    assert out.shape == (B, O)

    print("KERNEL_OK")
</pallas_src>

<mosaic_0001>
module attributes {stable_mosaic.version = 11 : i64} {
  func.func @lstm_wavefront_kernel(%arg0: memref<16x4xf32, #tpu.memory_space<vmem>>, %arg1: memref<4x256xf32, #tpu.memory_space<vmem>>, %arg2: memref<1x256xf32, #tpu.memory_space<vmem>>, %arg3: memref<64x256xf32, #tpu.memory_space<vmem>>, %arg4: memref<32x4xf32, #tpu.memory_space<vmem>>, %arg5: memref<1x4xf32, #tpu.memory_space<vmem>>, %arg6: memref<2x4xf32, #tpu.memory_space<vmem>>) attributes {dimension_semantics = [], scalar_prefetch = 0 : i64, scratch_operands = 0 : i64, tpu.core_type = #tpu.core_type<tc>} {
    %c0 = arith.constant 0 : index
    %c0_0 = arith.constant 0 : index
    %0 = vector.load %arg0[%c0, %c0_0] : memref<16x4xf32, #tpu.memory_space<vmem>>, vector<16x4xf32>
    %c0_1 = arith.constant 0 : index
    %c0_2 = arith.constant 0 : index
    %1 = vector.load %arg1[%c0_1, %c0_2] : memref<4x256xf32, #tpu.memory_space<vmem>>, vector<4x256xf32>
    %cst = arith.constant dense<0.000000e+00> : vector<16x256xf32>
    %2 = tpu.matmul %0, %1, %cst {dimension_numbers = #tpu.dot_dimension_numbers<[1], [0], [0], [1], [0, 0, 1, 1], [], []>} : vector<16x4xf32>, vector<4x256xf32>, vector<16x256xf32> -> vector<16x256xf32>
    %c0_3 = arith.constant 0 : index
    %c0_4 = arith.constant 0 : index
    %3 = vector.load %arg2[%c0_3, %c0_4] : memref<1x256xf32, #tpu.memory_space<vmem>>, vector<1x256xf32>
    %4 = vector.broadcast %3 : vector<1x256xf32> to vector<16x256xf32>
    %5 = arith.addf %2, %4 : vector<16x256xf32>
    %c0_5 = arith.constant 0 : index
    %c0_6 = arith.constant 0 : index
    %6 = vector.load %arg3[%c0_5, %c0_6] : memref<64x256xf32, #tpu.memory_space<vmem>>, vector<64x256xf32>
    %cst_7 = arith.constant 0.000000e+00 : f32
    %7 = vector.broadcast %cst_7 : f32 to vector<2x64xf32>
    %cst_8 = arith.constant 0.000000e+00 : f32
    %8 = vector.broadcast %cst_8 : f32 to vector<2x64xf32>
    %9 = vector.extract_strided_slice %5 {offsets = [0, 0], sizes = [1, 256], strides = [1, 1]} : vector<16x256xf32> to vector<1x256xf32>
    %10 = vector.extract_strided_slice %5 {offsets = [8, 0], sizes = [1, 256], strides = [1, 1]} : vector<16x256xf32> to vector<1x256xf32>
    %11 = tpu.concatenate %9, %10 in 0 : vector<1x256xf32>, vector<1x256xf32> -> vector<2x256xf32>
    %cst_9 = arith.constant dense<0.000000e+00> : vector<2x256xf32>
    %12 = tpu.matmul %7, %6, %cst_9 {dimension_numbers = #tpu.dot_dimension_numbers<[1], [0], [0], [1], [0, 0, 1, 1], [], []>} : vector<2x64xf32>, vector<64x256xf32>, vector<2x256xf32> -> vector<2x256xf32>
    %13 = arith.addf %11, %12 : vector<2x256xf32>
    %cst_10 = arith.constant 5.000000e-01 : f32
    %14 = vector.broadcast %cst_10 : f32 to vector<2x256xf32>
    %15 = arith.mulf %14, %13 : vector<2x256xf32>
    %16 = math.tanh %15 : vector<2x256xf32>
    %cst_11 = arith.constant 5.000000e-01 : f32
    %17 = vector.broadcast %cst_11 : f32 to vector<2x256xf32>
    %18 = arith.mulf %17, %16 : vector<2x256xf32>
    %cst_12 = arith.constant 5.000000e-01 : f32
    %19 = vector.broadcast %cst_12 : f32 to vector<2x256xf32>
    %20 = arith.addf %18, %19 : vector<2x256xf32>
    %21 = math.tanh %13 : vector<2x256xf32>
    %22 = vector.extract_strided_slice %20 {offsets = [0, 0], sizes = [2, 64], strides = [1, 1]} : vector<2x256xf32> to vector<2x64xf32>
    %23 = vector.extract_strided_slice %20 {offsets = [0, 64], sizes = [2, 64], strides = [1, 1]} : vector<2x256xf32> to vector<2x64xf32>
    %24 = vector.extract_strided_slice %21 {offsets = [0, 128], sizes = [2, 64], strides = [1, 1]} : vector<2x256xf32> to vector<2x64xf32>
    %25 = vector.extract_strided_slice %20 {offsets = [0, 192], sizes = [2, 64], strides = [1, 1]} : vector<2x256xf32> to vector<2x64xf32>
    %26 = arith.mulf %23, %8 : vector<2x64xf32>
    %27 = arith.mulf %22, %24 : vector<2x64xf32>
    %28 = arith.addf %26, %27 : vector<2x64xf32>
    %29 = math.tanh %28 : vector<2x64xf32>
    %30 = arith.mulf %25, %29 : vector<2x64xf32>
    %31 = tpu.iota {dimensions = array<i32: 1>} : vector<1x64xi32>
    %c32_i32 = arith.constant 32 : i32
    %32 = vector.broadcast %c32_i32 : i32 to vector<1x64xi32>
    %33 = arith.cmpi slt, %31, %32 : vector<1x64xi32>
    %34 = arith.extui %33 : vector<1x64xi1> to vector<1x64xi32>
    %35 = arith.sitofp %34 : vector<1x64xi32> to vector<1x64xf32>
    %36 = vector.broadcast %35 : vector<1x64xf32> to vector<2x64xf32>
    %37 = arith.mulf %30, %36 : vector<2x64xf32>
    %38 = vector.broadcast %35 : vector<1x64xf32> to vector<2x64xf32>
    %39 = arith.mulf %28, %38 : vector<2x64xf32>
    %40 = vector.extract_strided_slice %5 {offsets = [1, 0], sizes = [1, 256], strides = [1, 1]} : vector<16x256xf32> to vector<1x256xf32>
    %41 = vector.extract_strided_slice %5 {offsets = [9, 0], sizes = [1, 256], strides = [1, 1]} : vector<16x256xf32> to vector<1x256xf32>
    %42 = tpu.concatenate %40, %41 in 0 : vector<1x256xf32>, vector<1x256xf32> -> vector<2x256xf32>
    %cst_13 = arith.constant dense<0.000000e+00> : vector<2x256xf32>
    %43 = tpu.matmul %37, %6, %cst_13 {dimension_numbers = #tpu.dot_dimension_numbers<[1], [0], [0], [1], [0, 0, 1, 1], [], []>} : vector<2x64xf32>, vector<64x256xf32>, vector<2x256xf32> -> vector<2x256xf32>
    %44 = arith.addf %42, %43 : vector<2x256xf32>
    %cst_14 = arith.constant 5.000000e-01 : f32
    %45 = vector.broadcast %cst_14 : f32 to vector<2x256xf32>
    %46 = arith.mulf %45, %44 : vector<2x256xf32>
    %47 = math.tanh %46 : vector<2x256xf32>
    %cst_15 = arith.constant 5.000000e-01 : f32
    %48 = vector.broadcast %cst_15 : f32 to vector<2x256xf32>
    %49 = arith.mulf %48, %47 : vector<2x256xf32>
    %cst_16 = arith.constant 5.000000e-01 : f32
    %50 = vector.broadcast %cst_16 : f32 to vector<2x256xf32>
    %51 = arith.addf %49, %50 : vector<2x256xf32>
    %52 = math.tanh %44 : vector<2x256xf32>
    %53 = vector.extract_strided_slice %51 {offsets = [0, 0], sizes = [2, 64], strides = [1, 1]} : vector<2x256xf32> to vector<2x64xf32>
    %54 = vector.extract_strided_slice %51 {offsets = [0, 64], sizes = [2, 64], strides = [1, 1]} : vector<2x256xf32> to vector<2x64xf32>
    %55 = vector.extract_strided_slice %52 {offsets = [0, 128], sizes = [2, 64], strides = [1, 1]} : vector<2x256xf32> to vector<2x64xf32>
    %56 = vector.extract_strided_slice %51 {offsets = [0, 192], sizes = [2, 64], strides = [1, 1]} : vector<2x256xf32> to vector<2x64xf32>
    %57 = arith.mulf %54, %39 : vector<2x64xf32>
    %58 = arith.mulf %53, %55 : vector<2x64xf32>
    %59 = arith.addf %57, %58 : vector<2x64xf32>
    %60 = math.tanh %59 : vector<2x64xf32>
    %61 = arith.mulf %56, %60 : vector<2x64xf32>
    %62 = vector.extract_strided_slice %5 {offsets = [2, 0], sizes = [1, 256], strides = [1, 1]} : vector<16x256xf32> to vector<1x256xf32>
    %63 = vector.extract_strided_slice %5 {offsets = [10, 0], sizes = [1, 256], strides = [1, 1]} : vector<16x256xf32> to vector<1x256xf32>
    %64 = tpu.concatenate %62, %63 in 0 : vector<1x256xf32>, vector<1x256xf32> -> vector<2x256xf32>
    %cst_17 = arith.constant dense<0.000000e+00> : vector<2x256xf32>
    %65 = tpu.matmul %61, %6, %cst_17 {dimension_numbers = #tpu.dot_dimension_numbers<[1], [0], [0], [1], [0, 0, 1, 1], [], []>} : vector<2x64xf32>, vector<64x256xf32>, vector<2x256xf32> -> vector<2x256xf32>
    %66 = arith.addf %64, %65 : vector<2x256xf32>
    %cst_18 = arith.constant 5.000000e-01 : f32
    %67 = vector.broadcast %cst_18 : f32 to vector<2x256xf32>
    %68 = arith.mulf %67, %66 : vector<2x256xf32>
    %69 = math.tanh %68 : vector<2x256xf32>
    %cst_19 = arith.constant 5.000000e-01 : f32
    %70 = vector.broadcast %cst_19 : f32 to vector<2x256xf32>
    %71 = arith.mulf %70, %69 : vector<2x256xf32>
    %cst_20 = arith.constant 5.000000e-01 : f32
    %72 = vector.broadcast %cst_20 : f32 to vector<2x256xf32>
    %73 = arith.addf %71, %72 : vector<2x256xf32>
    %74 = math.tanh %66 : vector<2x256xf32>
    %75 = vector.extract_strided_slice %73 {offsets = [0, 0], sizes = [2, 64], strides = [1, 1]} : vector<2x256xf32> to vector<2x64xf32>
    %76 = vector.extract_strided_slice %73 {offsets = [0, 64], sizes = [2, 64], strides = [1, 1]} : vector<2x256xf32> to vector<2x64xf32>
    %77 = vector.extract_strided_slice %74 {offsets = [0, 128], sizes = [2, 64], strides = [1, 1]} : vector<2x256xf32> to vector<2x64xf32>
    %78 = vector.extract_strided_slice %73 {offsets = [0, 192], sizes = [2, 64], strides = [1, 1]} : vector<2x256xf32> to vector<2x64xf32>
    %79 = arith.mulf %76, %59 : vector<2x64xf32>
    %80 = arith.mulf %75, %77 : vector<2x64xf32>
    %81 = arith.addf %79, %80 : vector<2x64xf32>
    %82 = math.tanh %81 : vector<2x64xf32>
    %83 = arith.mulf %78, %82 : vector<2x64xf32>
    %84 = vector.extract_strided_slice %5 {offsets = [3, 0], sizes = [1, 256], strides = [1, 1]} : vector<16x256xf32> to vector<1x256xf32>
    %85 = vector.extract_strided_slice %5 {offsets = [11, 0], sizes = [1, 256], strides = [1, 1]} : vector<16x256xf32> to vector<1x256xf32>
    %86 = tpu.concatenate %84, %85 in 0 : vector<1x256xf32>, vector<1x256xf32> -> vector<2x256xf32>
    %cst_21 = arith.constant dense<0.000000e+00> : vector<2x256xf32>
    %87 = tpu.matmul %83, %6, %cst_21 {dimension_numbers = #tpu.dot_dimension_numbers<[1], [0], [0], [1], [0, 0, 1, 1], [], []>} : vector<2x64xf32>, vector<64x256xf32>, vector<2x256xf32> -> vector<2x256xf32>
    %88 = arith.addf %86, %87 : vector<2x256xf32>
    %cst_22 = arith.constant 5.000000e-01 : f32
    %89 = vector.broadcast %cst_22 : f32 to vector<2x256xf32>
    %90 = arith.mulf %89, %88 : vector<2x256xf32>
    %91 = math.tanh %90 : vector<2x256xf32>
    %cst_23 = arith.constant 5.000000e-01 : f32
    %92 = vector.broadcast %cst_23 : f32 to vector<2x256xf32>
    %93 = arith.mulf %92, %91 : vector<2x256xf32>
    %cst_24 = arith.constant 5.000000e-01 : f32
    %94 = vector.broadcast %cst_24 : f32 to vector<2x256xf32>
    %95 = arith.addf %93, %94 : vector<2x256xf32>
    %96 = math.tanh %88 : vector<2x256xf32>
    %97 = vector.extract_strided_slice %95 {offsets = [0, 0], sizes = [2, 64], strides = [1, 1]} : vector<2x256xf32> to vector<2x64xf32>
    %98 = vector.extract_strided_slice %95 {offsets = [0, 64], sizes = [2, 64], strides = [1, 1]} : vector<2x256xf32> to vector<2x64xf32>
    %99 = vector.extract_strided_slice %96 {offsets = [0, 128], sizes = [2, 64], strides = [1, 1]} : vector<2x256xf32> to vector<2x64xf32>
    %100 = vector.extract_strided_slice %95 {offsets = [0, 192], sizes = [2, 64], strides = [1, 1]} : vector<2x256xf32> to vector<2x64xf32>
    %101 = arith.mulf %98, %81 : vector<2x64xf32>
    %102 = arith.mulf %97, %99 : vector<2x64xf32>
    %103 = arith.addf %101, %102 : vector<2x64xf32>
    %104 = math.tanh %103 : vector<2x64xf32>
    %105 = arith.mulf %100, %104 : vector<2x64xf32>
    %106 = vector.extract_strided_slice %5 {offsets = [4, 0], sizes = [1, 256], strides = [1, 1]} : vector<16x256xf32> to vector<1x256xf32>
    %107 = vector.extract_strided_slice %5 {offsets = [12, 0], sizes = [1, 256], strides = [1, 1]} : vector<16x256xf32> to vector<1x256xf32>
    %108 = tpu.concatenate %106, %107 in 0 : vector<1x256xf32>, vector<1x256xf32> -> vector<2x256xf32>
    %cst_25 = arith.constant dense<0.000000e+00> : vector<2x256xf32>
    %109 = tpu.matmul %105, %6, %cst_25 {dimension_numbers = #tpu.dot_dimension_numbers<[1], [0], [0], [1], [0, 0, 1, 1], [], []>} : vector<2x64xf32>, vector<64x256xf32>, vector<2x256xf32> -> vector<2x256xf32>
    %110 = arith.addf %108, %109 : vector<2x256xf32>
    %cst_26 = arith.constant 5.000000e-01 : f32
    %111 = vector.broadcast %cst_26 : f32 to vector<2x256xf32>
    %112 = arith.mulf %111, %110 : vector<2x256xf32>
    %113 = math.tanh %112 : vector<2x256xf32>
    %cst_27 = arith.constant 5.000000e-01 : f32
    %114 = vector.broadcast %cst_27 : f32 to vector<2x256xf32>
    %115 = arith.mulf %114, %113 : vector<2x256xf32>
    %cst_28 = arith.constant 5.000000e-01 : f32
    %116 = vector.broadcast %cst_28 : f32 to vector<2x256xf32>
    %117 = arith.addf %115, %116 : vector<2x256xf32>
    %118 = math.tanh %110 : vector<2x256xf32>
    %119 = vector.extract_strided_slice %117 {offsets = [0, 0], sizes = [2, 64], strides = [1, 1]} : vector<2x256xf32> to vector<2x64xf32>
    %120 = vector.extract_strided_slice %117 {offsets = [0, 64], sizes = [2, 64], strides = [1, 1]} : vector<2x256xf32> to vector<2x64xf32>
    %121 = vector.extract_strided_slice %118 {offsets = [0, 128], sizes = [2, 64], strides = [1, 1]} : vector<2x256xf32> to vector<2x64xf32>
    %122 = vector.extract_strided_slice %117 {offsets = [0, 192], sizes = [2, 64], strides = [1, 1]} : vector<2x256xf32> to vector<2x64xf32>
    %123 = arith.mulf %120, %103 : vector<2x64xf32>
    %124 = arith.mulf %119, %121 : vector<2x64xf32>
    %125 = arith.addf %123, %124 : vector<2x64xf32>
    %126 = math.tanh %125 : vector<2x64xf32>
    %127 = arith.mulf %122, %126 : vector<2x64xf32>
    %128 = vector.extract_strided_slice %5 {offsets = [5, 0], sizes = [1, 256], strides = [1, 1]} : vector<16x256xf32> to vector<1x256xf32>
    %129 = vector.extract_strided_slice %5 {offsets = [13, 0], sizes = [1, 256], strides = [1, 1]} : vector<16x256xf32> to vector<1x256xf32>
    %130 = tpu.concatenate %128, %129 in 0 : vector<1x256xf32>, vector<1x256xf32> -> vector<2x256xf32>
    %cst_29 = arith.constant dense<0.000000e+00> : vector<2x256xf32>
    %131 = tpu.matmul %127, %6, %cst_29 {dimension_numbers = #tpu.dot_dimension_numbers<[1], [0], [0], [1], [0, 0, 1, 1], [], []>} : vector<2x64xf32>, vector<64x256xf32>, vector<2x256xf32> -> vector<2x256xf32>
    %132 = arith.addf %130, %131 : vector<2x256xf32>
    %cst_30 = arith.constant 5.000000e-01 : f32
    %133 = vector.broadcast %cst_30 : f32 to vector<2x256xf32>
    %134 = arith.mulf %133, %132 : vector<2x256xf32>
    %135 = math.tanh %134 : vector<2x256xf32>
    %cst_31 = arith.constant 5.000000e-01 : f32
    %136 = vector.broadcast %cst_31 : f32 to vector<2x256xf32>
    %137 = arith.mulf %136, %135 : vector<2x256xf32>
    %cst_32 = arith.constant 5.000000e-01 : f32
    %138 = vector.broadcast %cst_32 : f32 to vector<2x256xf32>
    %139 = arith.addf %137, %138 : vector<2x256xf32>
    %140 = math.tanh %132 : vector<2x256xf32>
    %141 = vector.extract_strided_slice %139 {offsets = [0, 0], sizes = [2, 64], strides = [1, 1]} : vector<2x256xf32> to vector<2x64xf32>
    %142 = vector.extract_strided_slice %139 {offsets = [0, 64], sizes = [2, 64], strides = [1, 1]} : vector<2x256xf32> to vector<2x64xf32>
    %143 = vector.extract_strided_slice %140 {offsets = [0, 128], sizes = [2, 64], strides = [1, 1]} : vector<2x256xf32> to vector<2x64xf32>
    %144 = vector.extract_strided_slice %139 {offsets = [0, 192], sizes = [2, 64], strides = [1, 1]} : vector<2x256xf32> to vector<2x64xf32>
    %145 = arith.mulf %142, %125 : vector<2x64xf32>
    %146 = arith.mulf %141, %143 : vector<2x64xf32>
    %147 = arith.addf %145, %146 : vector<2x64xf32>
    %148 = math.tanh %147 : vector<2x64xf32>
    %149 = arith.mulf %144, %148 : vector<2x64xf32>
    %150 = vector.extract_strided_slice %5 {offsets = [6, 0], sizes = [1, 256], strides = [1, 1]} : vector<16x256xf32> to vector<1x256xf32>
    %151 = vector.extract_strided_slice %5 {offsets = [14, 0], sizes = [1, 256], strides = [1, 1]} : vector<16x256xf32> to vector<1x256xf32>
    %152 = tpu.concatenate %150, %151 in 0 : vector<1x256xf32>, vector<1x256xf32> -> vector<2x256xf32>
    %cst_33 = arith.constant dense<0.000000e+00> : vector<2x256xf32>
    %153 = tpu.matmul %149, %6, %cst_33 {dimension_numbers = #tpu.dot_dimension_numbers<[1], [0], [0], [1], [0, 0, 1, 1], [], []>} : vector<2x64xf32>, vector<64x256xf32>, vector<2x256xf32> -> vector<2x256xf32>
    %154 = arith.addf %152, %153 : vector<2x256xf32>
    %cst_34 = arith.constant 5.000000e-01 : f32
    %155 = vector.broadcast %cst_34 : f32 to vector<2x256xf32>
    %156 = arith.mulf %155, %154 : vector<2x256xf32>
    %157 = math.tanh %156 : vector<2x256xf32>
    %cst_35 = arith.constant 5.000000e-01 : f32
    %158 = vector.broadcast %cst_35 : f32 to vector<2x256xf32>
    %159 = arith.mulf %158, %157 : vector<2x256xf32>
    %cst_36 = arith.constant 5.000000e-01 : f32
    %160 = vector.broadcast %cst_36 : f32 to vector<2x256xf32>
    %161 = arith.addf %159, %160 : vector<2x256xf32>
    %162 = math.tanh %154 : vector<2x256xf32>
    %163 = vector.extract_strided_slice %161 {offsets = [0, 0], sizes = [2, 64], strides = [1, 1]} : vector<2x256xf32> to vector<2x64xf32>
    %164 = vector.extract_strided_slice %161 {offsets = [0, 64], sizes = [2, 64], strides = [1, 1]} : vector<2x256xf32> to vector<2x64xf32>
    %165 = vector.extract_strided_slice %162 {offsets = [0, 128], sizes = [2, 64], strides = [1, 1]} : vector<2x256xf32> to vector<2x64xf32>
    %166 = vector.extract_strided_slice %161 {offsets = [0, 192], sizes = [2, 64], strides = [1, 1]} : vector<2x256xf32> to vector<2x64xf32>
    %167 = arith.mulf %164, %147 : vector<2x64xf32>
    %168 = arith.mulf %163, %165 : vector<2x64xf32>
    %169 = arith.addf %167, %168 : vector<2x64xf32>
    %170 = math.tanh %169 : vector<2x64xf32>
    %171 = arith.mulf %166, %170 : vector<2x64xf32>
    %172 = vector.extract_strided_slice %5 {offsets = [7, 0], sizes = [1, 256], strides = [1, 1]} : vector<16x256xf32> to vector<1x256xf32>
    %173 = vector.extract_strided_slice %5 {offsets = [15, 0], sizes = [1, 256], strides = [1, 1]} : vector<16x256xf32> to vector<1x256xf32>
    %174 = tpu.concatenate %172, %173 in 0 : vector<1x256xf32>, vector<1x256xf32> -> vector<2x256xf32>
    %cst_37 = arith.constant dense<0.000000e+00> : vector<2x256xf32>
    %175 = tpu.matmul %171, %6, %cst_37 {dimension_numbers = #tpu.dot_dimension_numbers<[1], [0], [0], [1], [0, 0, 1, 1], [], []>} : vector<2x64xf32>, vector<64x256xf32>, vector<2x256xf32> -> vector<2x256xf32>
    %176 = arith.addf %174, %175 : vector<2x256xf32>
    %cst_38 = arith.constant 5.000000e-01 : f32
    %177 = vector.broadcast %cst_38 : f32 to vector<2x256xf32>
    %178 = arith.mulf %177, %176 : vector<2x256xf32>
    %179 = math.tanh %178 : vector<2x256xf32>
    %cst_39 = arith.constant 5.000000e-01 : f32
    %180 = vector.broadcast %cst_39 : f32 to vector<2x256xf32>
    %181 = arith.mulf %180, %179 : vector<2x256xf32>
    %cst_40 = arith.constant 5.000000e-01 : f32
    %182 = vector.broadcast %cst_40 : f32 to vector<2x256xf32>
    %183 = arith.addf %181, %182 : vector<2x256xf32>
    %184 = math.tanh %176 : vector<2x256xf32>
    %185 = vector.extract_strided_slice %183 {offsets = [0, 0], sizes = [2, 64], strides = [1, 1]} : vector<2x256xf32> to vector<2x64xf32>
    %186 = vector.extract_strided_slice %183 {offsets = [0, 64], sizes = [2, 64], strides = [1, 1]} : vector<2x256xf32> to vector<2x64xf32>
    %187 = vector.extract_strided_slice %184 {offsets = [0, 128], sizes = [2, 64], strides = [1, 1]} : vector<2x256xf32> to vector<2x64xf32>
    %188 = vector.extract_strided_slice %183 {offsets = [0, 192], sizes = [2, 64], strides = [1, 1]} : vector<2x256xf32> to vector<2x64xf32>
    %189 = arith.mulf %186, %169 : vector<2x64xf32>
    %190 = arith.mulf %185, %187 : vector<2x64xf32>
    %191 = arith.addf %189, %190 : vector<2x64xf32>
    %192 = math.tanh %191 : vector<2x64xf32>
    %193 = arith.mulf %188, %192 : vector<2x64xf32>
    %194 = vector.extract_strided_slice %5 {offsets = [7, 0], sizes = [1, 256], strides = [1, 1]} : vector<16x256xf32> to vector<1x256xf32>
    %195 = vector.extract_strided_slice %5 {offsets = [15, 0], sizes = [1, 256], strides = [1, 1]} : vector<16x256xf32> to vector<1x256xf32>
    %196 = tpu.concatenate %194, %195 in 0 : vector<1x256xf32>, vector<1x256xf32> -> vector<2x256xf32>
    %cst_41 = arith.constant dense<0.000000e+00> : vector<2x256xf32>
    %197 = tpu.matmul %193, %6, %cst_41 {dimension_numbers = #tpu.dot_dimension_numbers<[1], [0], [0], [1], [0, 0, 1, 1], [], []>} : vector<2x64xf32>, vector<64x256xf32>, vector<2x256xf32> -> vector<2x256xf32>
    %198 = arith.addf %196, %197 : vector<2x256xf32>
    %cst_42 = arith.constant 5.000000e-01 : f32
    %199 = vector.broadcast %cst_42 : f32 to vector<2x256xf32>
    %200 = arith.mulf %199, %198 : vector<2x256xf32>
    %201 = math.tanh %200 : vector<2x256xf32>
    %cst_43 = arith.constant 5.000000e-01 : f32
    %202 = vector.broadcast %cst_43 : f32 to vector<2x256xf32>
    %203 = arith.mulf %202, %201 : vector<2x256xf32>
    %cst_44 = arith.constant 5.000000e-01 : f32
    %204 = vector.broadcast %cst_44 : f32 to vector<2x256xf32>
    %205 = arith.addf %203, %204 : vector<2x256xf32>
    %206 = math.tanh %198 : vector<2x256xf32>
    %207 = vector.extract_strided_slice %205 {offsets = [0, 0], sizes = [2, 64], strides = [1, 1]} : vector<2x256xf32> to vector<2x64xf32>
    %208 = vector.extract_strided_slice %205 {offsets = [0, 64], sizes = [2, 64], strides = [1, 1]} : vector<2x256xf32> to vector<2x64xf32>
    %209 = vector.extract_strided_slice %206 {offsets = [0, 128], sizes = [2, 64], strides = [1, 1]} : vector<2x256xf32> to vector<2x64xf32>
    %210 = vector.extract_strided_slice %205 {offsets = [0, 192], sizes = [2, 64], strides = [1, 1]} : vector<2x256xf32> to vector<2x64xf32>
    %211 = arith.mulf %208, %191 : vector<2x64xf32>
    %212 = arith.mulf %207, %209 : vector<2x64xf32>
    %213 = arith.addf %211, %212 : vector<2x64xf32>
    %214 = math.tanh %213 : vector<2x64xf32>
    %215 = arith.mulf %210, %214 : vector<2x64xf32>
    %216 = vector.extract_strided_slice %215 {offsets = [0, 32], sizes = [2, 32], strides = [1, 1]} : vector<2x64xf32> to vector<2x32xf32>
    %c0_45 = arith.constant 0 : index
    %c0_46 = arith.constant 0 : index
    %217 = vector.load %arg4[%c0_45, %c0_46] : memref<32x4xf32, #tpu.memory_space<vmem>>, vector<32x4xf32>
    %cst_47 = arith.constant dense<0.000000e+00> : vector<2x4xf32>
    %218 = tpu.matmul %216, %217, %cst_47 {dimension_numbers = #tpu.dot_dimension_numbers<[1], [0], [0], [1], [0, 0, 1, 1], [], []>} : vector<2x32xf32>, vector<32x4xf32>, vector<2x4xf32> -> vector<2x4xf32>
    %c0_48 = arith.constant 0 : index
    %c0_49 = arith.constant 0 : index
    %219 = vector.load %arg5[%c0_48, %c0_49] : memref<1x4xf32, #tpu.memory_space<vmem>>, vector<1x4xf32>
    %220 = vector.broadcast %219 : vector<1x4xf32> to vector<2x4xf32>
    %221 = arith.addf %218, %220 : vector<2x4xf32>
    %c0_50 = arith.constant 0 : index
    %c0_51 = arith.constant 0 : index
    %222 = vector.load %arg6[%c0_50, %c0_51] : memref<2x4xf32, #tpu.memory_space<vmem>>, vector<2x4xf32>
    tpu.vector_store %arg6[%c0_50, %c0_51], %221 {strides = array<i32>} : memref<2x4xf32, #tpu.memory_space<vmem>>, vector<2x4xf32>,
    return
  }
}

</mosaic_0001>

<llo_original>
// kernel: lstm_forecast_forward.1
$region0: #{lstm_forecast_forward.1}
  #allocation0 [shape = 'u32[]', space=smem, size = 0x4, offset = 0x4, fixed_abs, tag = 'smem constant byte address 0x4 - core index']
  #allocation1 [shape = 'u32[72,128]{1,0:T(1,128)}', space=vmem, size = 0x9000, scoped, tag = 'internal scratch']
  %s0 = inlined_call_operand.vmem [shape: f32[16,4], index: 0, kind: input, shape index: {}]
  %s1 = inlined_call_operand.vmem [shape: f32[4,256], index: 1, kind: input, shape index: {}]
  %s2 = inlined_call_operand.vmem [shape: f32[1,256], index: 2, kind: input, shape index: {}]
  %s3 = inlined_call_operand.hbm [shape: f32[64,256], index: 3, kind: input, shape index: {}]
  %s4 = inlined_call_operand.vmem [shape: f32[32,4], index: 4, kind: input, shape index: {}]
  %s5 = inlined_call_operand.vmem [shape: f32[1,4], index: 5, kind: input, shape index: {}]
  %s6 = inlined_call_operand.hbm [shape: f32[2,4], index: 6, kind: output, shape index: {}]
  %s7 = sld [smem:[#allocation0]]
  $region38: #{lstm_forecast_forward.1} parent=0
    _
  %s9 = ssub.s32 1, %s7
  %s10 = scalar_select 0, %s9, %s7
  $region1: #{lstm_forecast_forward.1} parent=0
    #allocation2 [shape = 'u8[65536]{0}', space=vmem, size = 0x10000, scoped, tag = 'input window, operand 3, single buffered']
    #allocation3 [shape = 's32[1]{0}', space=sflag, size = 0x4, scoped, tag = 'scoped memory for lstm_forecast_forward.1']
    #allocation4 [shape = 's32[1]{0}', space=sflag, size = 0x4, scoped, tag = 'scoped memory for lstm_forecast_forward.1']
    #allocation5 [shape = 'u8[1024]{0}', space=vmem, size = 0x400, scoped, tag = 'output window, operand 0, single buffered']
    %11 = vsyncpa [#allocation3], 0
    %12 = vsyncpa [#allocation4], 0
    // Predicated region
    $region2: #{lstm_forecast_forward.1} parent=1 // pred_check
      _
    $region3: #{lstm_forecast_forward.1} parent=1 // pred_check_branch
      %14 = sbr.rel (0) target = $region5
    $region4: #{lstm_forecast_forward.1} parent=1 // pred_region
      _
    $region5: #{lstm_forecast_forward.1} parent=1 // pred_fallthru
      _
    // Predicated region
    $region6: #{lstm_forecast_forward.1} parent=1 // pred_check
      _
    $region7: #{lstm_forecast_forward.1} parent=1 // pred_check_branch
      %16 = sbr.rel (0) target = $region9
    $region8: #{lstm_forecast_forward.1} parent=1 // pred_region
      _
    $region9: #{lstm_forecast_forward.1} parent=1 // pred_fallthru
      _
    // Predicated region
    $region10: #{lstm_forecast_forward.1} parent=1 // pred_check
      _
    $region11: #{lstm_forecast_forward.1} parent=1 // pred_check_branch
      %18 = sbr.rel (0) target = $region13
    $region12: #{lstm_forecast_forward.1} parent=1 // pred_region
      _
    $region13: #{lstm_forecast_forward.1} parent=1 // pred_fallthru
      _
    // Predicated region
    $region14: #{lstm_forecast_forward.1} parent=1 // pred_check
      _
    $region15: #{lstm_forecast_forward.1} parent=1 // pred_check_branch
      %20 = sbr.rel (0) target = $region17
    $region16: #{lstm_forecast_forward.1} parent=1 // pred_region
      %22 = vsyncadd [#allocation3], 0
      %s23 = sshll.u32 %s3, 4
      %s24 = int_to_ptr.hbm [resolvable:$true] %s23
      %s25 = sshll.u32 [#allocation2], 4
      %s26 = int_to_ptr.vmem [resolvable:$true] %s25
      %31 = dma.hbm_to_vmem [thread:$0]  %s24, 2048, %s26, [#allocation3], 256, 256, 16
    $region17: #{lstm_forecast_forward.1} parent=1 // pred_fallthru
      _
    // Predicated region
    $region18: #{lstm_forecast_forward.1} parent=1 // pred_check
      _
    $region19: #{lstm_forecast_forward.1} parent=1 // pred_check_branch
      %33 = sbr.rel (0) target = $region21
    $region20: #{lstm_forecast_forward.1} parent=1 // pred_region
      _
    $region21: #{lstm_forecast_forward.1} parent=1 // pred_fallthru
      _
    // Predicated region
    $region22: #{lstm_forecast_forward.1} parent=1 // pred_check
      _
    $region23: #{lstm_forecast_forward.1} parent=1 // pred_check_branch
      %35 = sbr.rel (0) target = $region25
    $region24: #{lstm_forecast_forward.1} parent=1 // pred_region
      _
    $region25: #{lstm_forecast_forward.1} parent=1 // pred_fallthru
      _
    // Predicated region
    $region26: #{lstm_forecast_forward.1} parent=1 // pred_check
      _
    $region27: #{lstm_forecast_forward.1} parent=1 // pred_check_branch
      %37 = sbr.rel (0) target = $region29
    $region28: #{lstm_forecast_forward.1} parent=1 // pred_region
      %39 = dma.done [#allocation3], 2048
    $region29: #{lstm_forecast_forward.1} parent=1 // pred_fallthru
      _
    %v40 = vld [vmem:[%s0] sm:$0xff]
    %v41 = vld [vmem:[%s0 + $0x8] sm:$0xff]
    %v42 = vld [vmem:[%s1] sm:$0xff]
    %v43 = vld [vmem:[%s2] sm:$0x3]
    %v45 = vperm.slane %v43, 0
    %v46 = vperm.slane %v43, 1
    %50 = vst [vmem:[#allocation1] ss:$2 sm:$0xff] %v42
    %v51 = vld.sshfl [vmem:[#allocation1] sm:$0xff pattern:$0x75316420]
    %v52 = vld.sshfl [vmem:[#allocation1 + $0x8] sm:$0xff pattern:$0x75316420]
    %vm53 = vcmask 31744
    %v55 = vsel %vm53, %v40, 0
    %v58 = vsel %vm53, %v41, 0
    %vm60 = vcmask 1043456
    %v61 = vsel %vm60, %v51, 0
    %v63 = vsel %vm60, %v52, 0
    %65 = vmatpush.msra.mxu0 0.0
    %66 = vmatpush.msra.mxu0 0.0
    %67 = vmatpush.msra.mxu0 0.0
    %68 = vmatpush.msra.mxu0 0.0
    %69 = vmatpush.msra.mxu0 0.0
    %70 = vmatpush.msra.mxu0 0.0
    %71 = vmatpush.msra.mxu0 0.0
    %72 = vmatpush.msra.mxu0 0.0
    %73 = vmatpush.msra.mxu0 0.0
    %74 = vmatpush.msra.mxu0 0.0
    %75 = vmatpush.msra.mxu0 0.0
    %76 = vmatpush.msra.mxu0 0.0
    %77 = vmatpush.msra.mxu0 0.0
    %78 = vmatpush.msra.mxu0 0.0
    %79 = vmatpush.msra.mxu0 0.0
    %80 = vmatpush.msra.mxu0 %v61
    %81 = vmatmul.f32.gmra.mxu0 %v55
    %v82 = vpop.f32.mrf.mxu0
    %v83 = vadd.f32 %v45, %v82
    %84 = vmatmul.f32.gmra.mxu0 %v58
    %v85 = vpop.f32.mrf.mxu0
    %v86 = vadd.f32 %v45, %v85
    %87 = vdwg.mxu0
    %88 = vmatpush.msra.mxu0 0.0
    %89 = vmatpush.msra.mxu0 0.0
    %90 = vmatpush.msra.mxu0 0.0
    %91 = vmatpush.msra.mxu0 0.0
    %92 = vmatpush.msra.mxu0 0.0
    %93 = vmatpush.msra.mxu0 0.0
    %94 = vmatpush.msra.mxu0 0.0
    %95 = vmatpush.msra.mxu0 0.0
    %96 = vmatpush.msra.mxu0 0.0
    %97 = vmatpush.msra.mxu0 0.0
    %98 = vmatpush.msra.mxu0 0.0
    %99 = vmatpush.msra.mxu0 0.0
    %100 = vmatpush.msra.mxu0 0.0
    %101 = vmatpush.msra.mxu0 0.0
    %102 = vmatpush.msra.mxu0 0.0
    %103 = vmatpush.msra.mxu0 %v63
    %104 = vmatmul.f32.gmra.mxu0 %v55
    %v105 = vpop.f32.mrf.mxu0
    %v106 = vadd.f32 %v46, %v105
    %107 = vmatmul.f32.gmra.mxu0 %v58
    %v108 = vpop.f32.mrf.mxu0
    %v109 = vadd.f32 %v46, %v108
    %110 = vdwg.mxu0
    %v111 = vld [vmem:[#allocation2] sm:$0xff]
    %v112 = vld [vmem:[#allocation2 + $0x8] sm:$0xff]
    %v113 = vld [vmem:[#allocation2 + $0x10] sm:$0xff]
    %v114 = vld [vmem:[#allocation2 + $0x18] sm:$0xff]
    %v115 = vld [vmem:[#allocation2 + $0x20] sm:$0xff]
    %v116 = vld [vmem:[#allocation2 + $0x28] sm:$0xff]
    %v117 = vld [vmem:[#allocation2 + $0x30] sm:$0xff]
    %v118 = vld [vmem:[#allocation2 + $0x38] sm:$0xff]
    %v119 = vld [vmem:[#allocation2 + $0x40] sm:$0xff]
    %v120 = vld [vmem:[#allocation2 + $0x48] sm:$0xff]
    %v121 = vld [vmem:[#allocation2 + $0x50] sm:$0xff]
    %v122 = vld [vmem:[#allocation2 + $0x58] sm:$0xff]
    %v123 = vld [vmem:[#allocation2 + $0x60] sm:$0xff]
    %v124 = vld [vmem:[#allocation2 + $0x68] sm:$0xff]
    %v125 = vld [vmem:[#allocation2 + $0x70] sm:$0xff]
    %v126 = vld [vmem:[#allocation2 + $0x78] sm:$0xff]
    %v129 = vrot.slane %v86, 7
    %v130 = vrot.slane %v109, 7
    %vm133 = vcmask 1040384
    %v134 = vsel %vm133, %v83, %v129
    %v135 = vsel %vm133, %v106, %v130
    %vm136 = vcmask 523264
    %v138 = vsel %vm136, 0.0, 0
    %140 = vmatpush.msra.mxu0 0.0
    %141 = vmatpush.msra.mxu0 0.0
    %142 = vmatpush.msra.mxu0 0.0
    %143 = vmatpush.msra.mxu0 0.0
    %144 = vmatpush.msra.mxu0 0.0
    %145 = vmatpush.msra.mxu0 0.0
    %146 = vmatpush.msra.mxu0 0.0
    %147 = vmatpush.msra.mxu0 0.0
    %148 = vmatpush.msra.mxu0 %v125
    %149 = vmatpush.msra.mxu0 %v123
    %150 = vmatpush.msra.mxu0 %v121
    %151 = vmatpush.msra.mxu0 %v119
    %152 = vmatpush.msra.mxu0 %v117
    %153 = vmatpush.msra.mxu0 %v115
    %154 = vmatpush.msra.mxu0 %v113
    %155 = vmatpush.msra.mxu0 %v111
    %156 = vmatmul.f32.gmra.mxu0 %v138
    %v157 = vpop.f32.mrf.mxu0
    %v158 = vadd.f32 0.0, %v157
    %159 = vdwg.mxu0
    %160 = vmatpush.msra.mxu0 0.0
    %161 = vmatpush.msra.mxu0 0.0
    %162 = vmatpush.msra.mxu0 0.0
    %163 = vmatpush.msra.mxu0 0.0
    %164 = vmatpush.msra.mxu0 0.0
    %165 = vmatpush.msra.mxu0 0.0
    %166 = vmatpush.msra.mxu0 0.0
    %167 = vmatpush.msra.mxu0 0.0
    %168 = vmatpush.msra.mxu0 %v126
    %169 = vmatpush.msra.mxu0 %v124
    %170 = vmatpush.msra.mxu0 %v122
    %171 = vmatpush.msra.mxu0 %v120
    %172 = vmatpush.msra.mxu0 %v118
    %173 = vmatpush.msra.mxu0 %v116
    %174 = vmatpush.msra.mxu0 %v114
    %175 = vmatpush.msra.mxu0 %v112
    %176 = vmatmul.f32.gmra.mxu0 %v138
    %v177 = vpop.f32.mrf.mxu0
    %v178 = vadd.f32 0.0, %v177
    %179 = vdwg.mxu0
    %v180 = vadd.f32 %v134, %v158
    %v181 = vadd.f32 %v135, %v178
    %v182 = vmul.f32 %v180, 0.5
    %v183 = vmul.f32 %v181, 0.5
    %v184 = vtanh.pop %v182
    %v185 = vtanh.pop %v183
    %v186 = vmul.f32 %v184, 0.5
    %v187 = vmul.f32 %v185, 0.5
    %v188 = vadd.f32 %v186, 0.5
    %v189 = vadd.f32 %v187, 0.5
    %v190 = vtanh.pop %v181
    %v191 = vmul.f32 %v188, 0.0
    %v192 = vmul.f32 %v188, %v190
    %194 = vrot.lane.b32.xlu0 %v192, 64
    %v195 = vpop.permute.xlu0 %194
    %v197 = vadd.f32 %v191, %v195
    %v198 = vtanh.pop %v197
    %v199 = vmul.f32 %v189, %v198
    %v200 = vlaneseq
    %v201 = vand.u32 %v200, 127
    %vm202 = vcmp.lt.s32.totalorder %v201, 32
    %v203 = vsel %vm202, 1, 0
    %v204 = vcvt.s32.f32 %v203
    %206 = vrot.lane.b32.xlu0 %v204, 64
    %v207 = vpop.permute.xlu0 %206
    %v209 = vmul.f32 %v199, %v207
    %v210 = vmul.f32 %v197, %v207
    %v213 = vrot.slane %v83, 1
    %v214 = vrot.slane %v106, 1
    %v217 = vsel %vm133, %v213, %v86
    %v218 = vsel %vm133, %v214, %v109
    %220 = vrot.lane.b32.xlu0 %v209, 64
    %v221 = vpop.permute.xlu0 %220
    %v222 = vsel %vm136, %v221, 0
    %224 = vmatpush.msra.mxu0 0.0
    %225 = vmatpush.msra.mxu0 0.0
    %226 = vmatpush.msra.mxu0 0.0
    %227 = vmatpush.msra.mxu0 0.0
    %228 = vmatpush.msra.mxu0 0.0
    %229 = vmatpush.msra.mxu0 0.0
    %230 = vmatpush.msra.mxu0 0.0
    %231 = vmatpush.msra.mxu0 0.0
    %232 = vmatpush.msra.mxu0 %v125
    %233 = vmatpush.msra.mxu0 %v123
    %234 = vmatpush.msra.mxu0 %v121
    %235 = vmatpush.msra.mxu0 %v119
    %236 = vmatpush.msra.mxu0 %v117
    %237 = vmatpush.msra.mxu0 %v115
    %238 = vmatpush.msra.mxu0 %v113
    %239 = vmatpush.msra.mxu0 %v111
    %240 = vmatmul.f32.gmra.mxu0 %v222
    %v241 = vpop.f32.mrf.mxu0
    %v242 = vadd.f32 0.0, %v241
    %243 = vdwg.mxu0
    %244 = vmatpush.msra.mxu0 0.0
    %245 = vmatpush.msra.mxu0 0.0
    %246 = vmatpush.msra.mxu0 0.0
    %247 = vmatpush.msra.mxu0 0.0
    %248 = vmatpush.msra.mxu0 0.0
    %249 = vmatpush.msra.mxu0 0.0
    %250 = vmatpush.msra.mxu0 0.0
    %251 = vmatpush.msra.mxu0 0.0
    %252 = vmatpush.msra.mxu0 %v126
    %253 = vmatpush.msra.mxu0 %v124
    %254 = vmatpush.msra.mxu0 %v122
    %255 = vmatpush.msra.mxu0 %v120
    %256 = vmatpush.msra.mxu0 %v118
    %257 = vmatpush.msra.mxu0 %v116
    %258 = vmatpush.msra.mxu0 %v114
    %259 = vmatpush.msra.mxu0 %v112
    %260 = vmatmul.f32.gmra.mxu0 %v222
    %v261 = vpop.f32.mrf.mxu0
    %v262 = vadd.f32 0.0, %v261
    %263 = vdwg.mxu0
    %v264 = vadd.f32 %v217, %v242
    %v265 = vadd.f32 %v218, %v262
    %v266 = vmul.f32 %v264, 0.5
    %v267 = vmul.f32 %v265, 0.5
    %v268 = vtanh.pop %v266
    %v269 = vtanh.pop %v267
    %v270 = vmul.f32 %v268, 0.5
    %v271 = vmul.f32 %v269, 0.5
    %v272 = vadd.f32 %v270, 0.5
    %v273 = vadd.f32 %v271, 0.5
    %v274 = vtanh.pop %v265
    %v275 = vmul.f32 %v272, %v210
    %v276 = vmul.f32 %v272, %v274
    %278 = vrot.lane.b32.xlu0 %v276, 64
    %v279 = vpop.permute.xlu0 %278
    %v281 = vadd.f32 %v275, %v279
    %v282 = vtanh.pop %v281
    %v283 = vmul.f32 %v273, %v282
    %v284 = vrot.slane %v83, 2
    %v285 = vrot.slane %v106, 2
    %v288 = vrot.slane %v86, 1
    %v289 = vrot.slane %v109, 1
    %v292 = vsel %vm133, %v284, %v288
    %v293 = vsel %vm133, %v285, %v289
    %295 = vrot.lane.b32.xlu0 %v283, 64
    %v296 = vpop.permute.xlu0 %295
    %v297 = vsel %vm136, %v296, 0
    %299 = vmatpush.msra.mxu0 0.0
    %300 = vmatpush.msra.mxu0 0.0
    %301 = vmatpush.msra.mxu0 0.0
    %302 = vmatpush.msra.mxu0 0.0
    %303 = vmatpush.msra.mxu0 0.0
    %304 = vmatpush.msra.mxu0 0.0
    %305 = vmatpush.msra.mxu0 0.0
    %306 = vmatpush.msra.mxu0 0.0
    %307 = vmatpush.msra.mxu0 %v125
    %308 = vmatpush.msra.mxu0 %v123
    %309 = vmatpush.msra.mxu0 %v121
    %310 = vmatpush.msra.mxu0 %v119
    %311 = vmatpush.msra.mxu0 %v117
    %312 = vmatpush.msra.mxu0 %v115
    %313 = vmatpush.msra.mxu0 %v113
    %314 = vmatpush.msra.mxu0 %v111
    %315 = vmatmul.f32.gmra.mxu0 %v297
    %v316 = vpop.f32.mrf.mxu0
    %v317 = vadd.f32 0.0, %v316
    %318 = vdwg.mxu0
    %319 = vmatpush.msra.mxu0 0.0
    %320 = vmatpush.msra.mxu0 0.0
    %321 = vmatpush.msra.mxu0 0.0
    %322 = vmatpush.msra.mxu0 0.0
    %323 = vmatpush.msra.mxu0 0.0
    %324 = vmatpush.msra.mxu0 0.0
    %325 = vmatpush.msra.mxu0 0.0
    %326 = vmatpush.msra.mxu0 0.0
    %327 = vmatpush.msra.mxu0 %v126
    %328 = vmatpush.msra.mxu0 %v124
    %329 = vmatpush.msra.mxu0 %v122
    %330 = vmatpush.msra.mxu0 %v120
    %331 = vmatpush.msra.mxu0 %v118
    %332 = vmatpush.msra.mxu0 %v116
    %333 = vmatpush.msra.mxu0 %v114
    %334 = vmatpush.msra.mxu0 %v112
    %335 = vmatmul.f32.gmra.mxu0 %v297
    %v336 = vpop.f32.mrf.mxu0
    %v337 = vadd.f32 0.0, %v336
    %338 = vdwg.mxu0
    %v339 = vadd.f32 %v292, %v317
    %v340 = vadd.f32 %v293, %v337
    %v341 = vmul.f32 %v339, 0.5
    %v342 = vmul.f32 %v340, 0.5
    %v343 = vtanh.pop %v341
    %v344 = vtanh.pop %v342
    %v345 = vmul.f32 %v343, 0.5
    %v346 = vmul.f32 %v344, 0.5
    %v347 = vadd.f32 %v345, 0.5
    %v348 = vadd.f32 %v346, 0.5
    %v349 = vtanh.pop %v340
    %v350 = vmul.f32 %v347, %v281
    %v351 = vmul.f32 %v347, %v349
    %353 = vrot.lane.b32.xlu0 %v351, 64
    %v354 = vpop.permute.xlu0 %353
    %v356 = vadd.f32 %v350, %v354
    %v357 = vtanh.pop %v356
    %v358 = vmul.f32 %v348, %v357
    %v359 = vrot.slane %v83, 3
    %v360 = vrot.slane %v106, 3
    %v363 = vrot.slane %v86, 2
    %v364 = vrot.slane %v109, 2
    %v367 = vsel %vm133, %v359, %v363
    %v368 = vsel %vm133, %v360, %v364
    %370 = vrot.lane.b32.xlu0 %v358, 64
    %v371 = vpop.permute.xlu0 %370
    %v372 = vsel %vm136, %v371, 0
    %374 = vmatpush.msra.mxu0 0.0
    %375 = vmatpush.msra.mxu0 0.0
    %376 = vmatpush.msra.mxu0 0.0
    %377 = vmatpush.msra.mxu0 0.0
    %378 = vmatpush.msra.mxu0 0.0
    %379 = vmatpush.msra.mxu0 0.0
    %380 = vmatpush.msra.mxu0 0.0
    %381 = vmatpush.msra.mxu0 0.0
    %382 = vmatpush.msra.mxu0 %v125
    %383 = vmatpush.msra.mxu0 %v123
    %384 = vmatpush.msra.mxu0 %v121
    %385 = vmatpush.msra.mxu0 %v119
    %386 = vmatpush.msra.mxu0 %v117
    %387 = vmatpush.msra.mxu0 %v115
    %388 = vmatpush.msra.mxu0 %v113
    %389 = vmatpush.msra.mxu0 %v111
    %390 = vmatmul.f32.gmra.mxu0 %v372
    %v391 = vpop.f32.mrf.mxu0
    %v392 = vadd.f32 0.0, %v391
    %393 = vdwg.mxu0
    %394 = vmatpush.msra.mxu0 0.0
    %395 = vmatpush.msra.mxu0 0.0
    %396 = vmatpush.msra.mxu0 0.0
    %397 = vmatpush.msra.mxu0 0.0
    %398 = vmatpush.msra.mxu0 0.0
    %399 = vmatpush.msra.mxu0 0.0
    %400 = vmatpush.msra.mxu0 0.0
    %401 = vmatpush.msra.mxu0 0.0
    %402 = vmatpush.msra.mxu0 %v126
    %403 = vmatpush.msra.mxu0 %v124
    %404 = vmatpush.msra.mxu0 %v122
    %405 = vmatpush.msra.mxu0 %v120
    %406 = vmatpush.msra.mxu0 %v118
    %407 = vmatpush.msra.mxu0 %v116
    %408 = vmatpush.msra.mxu0 %v114
    %409 = vmatpush.msra.mxu0 %v112
    %410 = vmatmul.f32.gmra.mxu0 %v372
    %v411 = vpop.f32.mrf.mxu0
    %v412 = vadd.f32 0.0, %v411
    %413 = vdwg.mxu0
    %v414 = vadd.f32 %v367, %v392
    %v415 = vadd.f32 %v368, %v412
    %v416 = vmul.f32 %v414, 0.5
    %v417 = vmul.f32 %v415, 0.5
    %v418 = vtanh.pop %v416
    %v419 = vtanh.pop %v417
    %v420 = vmul.f32 %v418, 0.5
    %v421 = vmul.f32 %v419, 0.5
    %v422 = vadd.f32 %v420, 0.5
    %v423 = vadd.f32 %v421, 0.5
    %v424 = vtanh.pop %v415
    %v425 = vmul.f32 %v422, %v356
    %v426 = vmul.f32 %v422, %v424
    %428 = vrot.lane.b32.xlu0 %v426, 64
    %v429 = vpop.permute.xlu0 %428
    %v431 = vadd.f32 %v425, %v429
    %v432 = vtanh.pop %v431
    %v433 = vmul.f32 %v423, %v432
    %v434 = vrot.slane %v83, 4
    %v435 = vrot.slane %v106, 4
    %v438 = vrot.slane %v86, 3
    %v439 = vrot.slane %v109, 3
    %v442 = vsel %vm133, %v434, %v438
    %v443 = vsel %vm133, %v435, %v439
    %445 = vrot.lane.b32.xlu0 %v433, 64
    %v446 = vpop.permute.xlu0 %445
    %v447 = vsel %vm136, %v446, 0
    %449 = vmatpush.msra.mxu0 0.0
    %450 = vmatpush.msra.mxu0 0.0
    %451 = vmatpush.msra.mxu0 0.0
    %452 = vmatpush.msra.mxu0 0.0
    %453 = vmatpush.msra.mxu0 0.0
    %454 = vmatpush.msra.mxu0 0.0
    %455 = vmatpush.msra.mxu0 0.0
    %456 = vmatpush.msra.mxu0 0.0
    %457 = vmatpush.msra.mxu0 %v125
    %458 = vmatpush.msra.mxu0 %v123
    %459 = vmatpush.msra.mxu0 %v121
    %460 = vmatpush.msra.mxu0 %v119
    %461 = vmatpush.msra.mxu0 %v117
    %462 = vmatpush.msra.mxu0 %v115
    %463 = vmatpush.msra.mxu0 %v113
    %464 = vmatpush.msra.mxu0 %v111
    %465 = vmatmul.f32.gmra.mxu0 %v447
    %v466 = vpop.f32.mrf.mxu0
    %v467 = vadd.f32 0.0, %v466
    %468 = vdwg.mxu0
    %469 = vmatpush.msra.mxu0 0.0
    %470 = vmatpush.msra.mxu0 0.0
    %471 = vmatpush.msra.mxu0 0.0
    %472 = vmatpush.msra.mxu0 0.0
    %473 = vmatpush.msra.mxu0 0.0
    %474 = vmatpush.msra.mxu0 0.0
    %475 = vmatpush.msra.mxu0 0.0
    %476 = vmatpush.msra.mxu0 0.0
    %477 = vmatpush.msra.mxu0 %v126
    %478 = vmatpush.msra.mxu0 %v124
    %479 = vmatpush.msra.mxu0 %v122
    %480 = vmatpush.msra.mxu0 %v120
    %481 = vmatpush.msra.mxu0 %v118
    %482 = vmatpush.msra.mxu0 %v116
    %483 = vmatpush.msra.mxu0 %v114
    %484 = vmatpush.msra.mxu0 %v112
    %485 = vmatmul.f32.gmra.mxu0 %v447
    %v486 = vpop.f32.mrf.mxu0
    %v487 = vadd.f32 0.0, %v486
    %488 = vdwg.mxu0
    %v489 = vadd.f32 %v442, %v467
    %v490 = vadd.f32 %v443, %v487
    %v491 = vmul.f32 %v489, 0.5
    %v492 = vmul.f32 %v490, 0.5
    %v493 = vtanh.pop %v491
    %v494 = vtanh.pop %v492
    %v495 = vmul.f32 %v493, 0.5
    %v496 = vmul.f32 %v494, 0.5
    %v497 = vadd.f32 %v495, 0.5
    %v498 = vadd.f32 %v496, 0.5
    %v499 = vtanh.pop %v490
    %v500 = vmul.f32 %v497, %v431
    %v501 = vmul.f32 %v497, %v499
    %503 = vrot.lane.b32.xlu0 %v501, 64
    %v504 = vpop.permute.xlu0 %503
    %v506 = vadd.f32 %v500, %v504
    %v507 = vtanh.pop %v506
    %v508 = vmul.f32 %v498, %v507
    %v509 = vrot.slane %v83, 5
    %v510 = vrot.slane %v106, 5
    %v513 = vrot.slane %v86, 4
    %v514 = vrot.slane %v109, 4
    %v517 = vsel %vm133, %v509, %v513
    %v518 = vsel %vm133, %v510, %v514
    %520 = vrot.lane.b32.xlu0 %v508, 64
    %v521 = vpop.permute.xlu0 %520
    %v522 = vsel %vm136, %v521, 0
    %524 = vmatpush.msra.mxu0 0.0
    %525 = vmatpush.msra.mxu0 0.0
    %526 = vmatpush.msra.mxu0 0.0
    %527 = vmatpush.msra.mxu0 0.0
    %528 = vmatpush.msra.mxu0 0.0
    %529 = vmatpush.msra.mxu0 0.0
    %530 = vmatpush.msra.mxu0 0.0
    %531 = vmatpush.msra.mxu0 0.0
    %532 = vmatpush.msra.mxu0 %v125
    %533 = vmatpush.msra.mxu0 %v123
    %534 = vmatpush.msra.mxu0 %v121
    %535 = vmatpush.msra.mxu0 %v119
    %536 = vmatpush.msra.mxu0 %v117
    %537 = vmatpush.msra.mxu0 %v115
    %538 = vmatpush.msra.mxu0 %v113
    %539 = vmatpush.msra.mxu0 %v111
    %540 = vmatmul.f32.gmra.mxu0 %v522
    %v541 = vpop.f32.mrf.mxu0
    %v542 = vadd.f32 0.0, %v541
    %543 = vdwg.mxu0
    %544 = vmatpush.msra.mxu0 0.0
    %545 = vmatpush.msra.mxu0 0.0
    %546 = vmatpush.msra.mxu0 0.0
    %547 = vmatpush.msra.mxu0 0.0
    %548 = vmatpush.msra.mxu0 0.0
    %549 = vmatpush.msra.mxu0 0.0
    %550 = vmatpush.msra.mxu0 0.0
    %551 = vmatpush.msra.mxu0 0.0
    %552 = vmatpush.msra.mxu0 %v126
    %553 = vmatpush.msra.mxu0 %v124
    %554 = vmatpush.msra.mxu0 %v122
    %555 = vmatpush.msra.mxu0 %v120
    %556 = vmatpush.msra.mxu0 %v118
    %557 = vmatpush.msra.mxu0 %v116
    %558 = vmatpush.msra.mxu0 %v114
    %559 = vmatpush.msra.mxu0 %v112
    %560 = vmatmul.f32.gmra.mxu0 %v522
    %v561 = vpop.f32.mrf.mxu0
    %v562 = vadd.f32 0.0, %v561
    %563 = vdwg.mxu0
    %v564 = vadd.f32 %v517, %v542
    %v565 = vadd.f32 %v518, %v562
    %v566 = vmul.f32 %v564, 0.5
    %v567 = vmul.f32 %v565, 0.5
    %v568 = vtanh.pop %v566
    %v569 = vtanh.pop %v567
    %v570 = vmul.f32 %v568, 0.5
    %v571 = vmul.f32 %v569, 0.5
    %v572 = vadd.f32 %v570, 0.5
    %v573 = vadd.f32 %v571, 0.5
    %v574 = vtanh.pop %v565
    %v575 = vmul.f32 %v572, %v506
    %v576 = vmul.f32 %v572, %v574
    %578 = vrot.lane.b32.xlu0 %v576, 64
    %v579 = vpop.permute.xlu0 %578
    %v581 = vadd.f32 %v575, %v579
    %v582 = vtanh.pop %v581
    %v583 = vmul.f32 %v573, %v582
    %v584 = vrot.slane %v83, 6
    %v585 = vrot.slane %v106, 6
    %v588 = vrot.slane %v86, 5
    %v589 = vrot.slane %v109, 5
    %v592 = vsel %vm133, %v584, %v588
    %v593 = vsel %vm133, %v585, %v589
    %595 = vrot.lane.b32.xlu0 %v583, 64
    %v596 = vpop.permute.xlu0 %595
    %v597 = vsel %vm136, %v596, 0
    %599 = vmatpush.msra.mxu0 0.0
    %600 = vmatpush.msra.mxu0 0.0
    %601 = vmatpush.msra.mxu0 0.0
    %602 = vmatpush.msra.mxu0 0.0
    %603 = vmatpush.msra.mxu0 0.0
    %604 = vmatpush.msra.mxu0 0.0
    %605 = vmatpush.msra.mxu0 0.0
    %606 = vmatpush.msra.mxu0 0.0
    %607 = vmatpush.msra.mxu0 %v125
    %608 = vmatpush.msra.mxu0 %v123
    %609 = vmatpush.msra.mxu0 %v121
    %610 = vmatpush.msra.mxu0 %v119
    %611 = vmatpush.msra.mxu0 %v117
    %612 = vmatpush.msra.mxu0 %v115
    %613 = vmatpush.msra.mxu0 %v113
    %614 = vmatpush.msra.mxu0 %v111
    %615 = vmatmul.f32.gmra.mxu0 %v597
    %v616 = vpop.f32.mrf.mxu0
    %v617 = vadd.f32 0.0, %v616
    %618 = vdwg.mxu0
    %619 = vmatpush.msra.mxu0 0.0
    %620 = vmatpush.msra.mxu0 0.0
    %621 = vmatpush.msra.mxu0 0.0
    %622 = vmatpush.msra.mxu0 0.0
    %623 = vmatpush.msra.mxu0 0.0
    %624 = vmatpush.msra.mxu0 0.0
    %625 = vmatpush.msra.mxu0 0.0
    %626 = vmatpush.msra.mxu0 0.0
    %627 = vmatpush.msra.mxu0 %v126
    %628 = vmatpush.msra.mxu0 %v124
    %629 = vmatpush.msra.mxu0 %v122
    %630 = vmatpush.msra.mxu0 %v120
    %631 = vmatpush.msra.mxu0 %v118
    %632 = vmatpush.msra.mxu0 %v116
    %633 = vmatpush.msra.mxu0 %v114
    %634 = vmatpush.msra.mxu0 %v112
    %635 = vmatmul.f32.gmra.mxu0 %v597
    %v636 = vpop.f32.mrf.mxu0
    %v637 = vadd.f32 0.0, %v636
    %638 = vdwg.mxu0
    %v639 = vadd.f32 %v592, %v617
    %v640 = vadd.f32 %v593, %v637
    %v641 = vmul.f32 %v639, 0.5
    %v642 = vmul.f32 %v640, 0.5
    %v643 = vtanh.pop %v641
    %v644 = vtanh.pop %v642
    %v645 = vmul.f32 %v643, 0.5
    %v646 = vmul.f32 %v644, 0.5
    %v647 = vadd.f32 %v645, 0.5
    %v648 = vadd.f32 %v646, 0.5
    %v649 = vtanh.pop %v640
    %v650 = vmul.f32 %v647, %v581
    %v651 = vmul.f32 %v647, %v649
    %653 = vrot.lane.b32.xlu0 %v651, 64
    %v654 = vpop.permute.xlu0 %653
    %v656 = vadd.f32 %v650, %v654
    %v657 = vtanh.pop %v656
    %v658 = vmul.f32 %v648, %v657
    %v659 = vrot.slane %v83, 7
    %v660 = vrot.slane %v106, 7
    %v663 = vrot.slane %v86, 6
    %v664 = vrot.slane %v109, 6
    %v667 = vsel %vm133, %v659, %v663
    %v668 = vsel %vm133, %v660, %v664
    %670 = vrot.lane.b32.xlu0 %v658, 64
    %v671 = vpop.permute.xlu0 %670
    %v672 = vsel %vm136, %v671, 0
    %674 = vmatpush.msra.mxu0 0.0
    %675 = vmatpush.msra.mxu0 0.0
    %676 = vmatpush.msra.mxu0 0.0
    %677 = vmatpush.msra.mxu0 0.0
    %678 = vmatpush.msra.mxu0 0.0
    %679 = vmatpush.msra.mxu0 0.0
    %680 = vmatpush.msra.mxu0 0.0
    %681 = vmatpush.msra.mxu0 0.0
    %682 = vmatpush.msra.mxu0 %v125
    %683 = vmatpush.msra.mxu0 %v123
    %684 = vmatpush.msra.mxu0 %v121
    %685 = vmatpush.msra.mxu0 %v119
    %686 = vmatpush.msra.mxu0 %v117
    %687 = vmatpush.msra.mxu0 %v115
    %688 = vmatpush.msra.mxu0 %v113
    %689 = vmatpush.msra.mxu0 %v111
    %690 = vmatmul.f32.gmra.mxu0 %v672
    %v691 = vpop.f32.mrf.mxu0
    %v692 = vadd.f32 0.0, %v691
    %693 = vdwg.mxu0
    %694 = vmatpush.msra.mxu0 0.0
    %695 = vmatpush.msra.mxu0 0.0
    %696 = vmatpush.msra.mxu0 0.0
    %697 = vmatpush.msra.mxu0 0.0
    %698 = vmatpush.msra.mxu0 0.0
    %699 = vmatpush.msra.mxu0 0.0
    %700 = vmatpush.msra.mxu0 0.0
    %701 = vmatpush.msra.mxu0 0.0
    %702 = vmatpush.msra.mxu0 %v126
    %703 = vmatpush.msra.mxu0 %v124
    %704 = vmatpush.msra.mxu0 %v122
    %705 = vmatpush.msra.mxu0 %v120
    %706 = vmatpush.msra.mxu0 %v118
    %707 = vmatpush.msra.mxu0 %v116
    %708 = vmatpush.msra.mxu0 %v114
    %709 = vmatpush.msra.mxu0 %v112
    %710 = vmatmul.f32.gmra.mxu0 %v672
    %v711 = vpop.f32.mrf.mxu0
    %v712 = vadd.f32 0.0, %v711
    %713 = vdwg.mxu0
    %v714 = vadd.f32 %v667, %v692
    %v715 = vadd.f32 %v668, %v712
    %v716 = vmul.f32 %v714, 0.5
    %v717 = vmul.f32 %v715, 0.5
    %v718 = vtanh.pop %v716
    %v719 = vtanh.pop %v717
    %v720 = vmul.f32 %v718, 0.5
    %v721 = vmul.f32 %v719, 0.5
    %v722 = vadd.f32 %v720, 0.5
    %v723 = vadd.f32 %v721, 0.5
    %v724 = vtanh.pop %v715
    %v725 = vmul.f32 %v722, %v656
    %v726 = vmul.f32 %v722, %v724
    %728 = vrot.lane.b32.xlu0 %v726, 64
    %v729 = vpop.permute.xlu0 %728
    %v731 = vadd.f32 %v725, %v729
    %v732 = vtanh.pop %v731
    %v733 = vmul.f32 %v723, %v732
    %735 = vrot.lane.b32.xlu0 %v733, 64
    %v736 = vpop.permute.xlu0 %735
    %v737 = vsel %vm136, %v736, 0
    %739 = vmatpush.msra.mxu0 0.0
    %740 = vmatpush.msra.mxu0 0.0
    %741 = vmatpush.msra.mxu0 0.0
    %742 = vmatpush.msra.mxu0 0.0
    %743 = vmatpush.msra.mxu0 0.0
    %744 = vmatpush.msra.mxu0 0.0
    %745 = vmatpush.msra.mxu0 0.0
    %746 = vmatpush.msra.mxu0 0.0
    %747 = vmatpush.msra.mxu0 %v125
    %748 = vmatpush.msra.mxu0 %v123
    %749 = vmatpush.msra.mxu0 %v121
    %750 = vmatpush.msra.mxu0 %v119
    %751 = vmatpush.msra.mxu0 %v117
    %752 = vmatpush.msra.mxu0 %v115
    %753 = vmatpush.msra.mxu0 %v113
    %754 = vmatpush.msra.mxu0 %v111
    %755 = vmatmul.f32.gmra.mxu0 %v737
    %v756 = vpop.f32.mrf.mxu0
    %v757 = vadd.f32 0.0, %v756
    %758 = vdwg.mxu0
    %759 = vmatpush.msra.mxu0 0.0
    %760 = vmatpush.msra.mxu0 0.0
    %761 = vmatpush.msra.mxu0 0.0
    %762 = vmatpush.msra.mxu0 0.0
    %763 = vmatpush.msra.mxu0 0.0
    %764 = vmatpush.msra.mxu0 0.0
    %765 = vmatpush.msra.mxu0 0.0
    %766 = vmatpush.msra.mxu0 0.0
    %767 = vmatpush.msra.mxu0 %v126
    %768 = vmatpush.msra.mxu0 %v124
    %769 = vmatpush.msra.mxu0 %v122
    %770 = vmatpush.msra.mxu0 %v120
    %771 = vmatpush.msra.mxu0 %v118
    %772 = vmatpush.msra.mxu0 %v116
    %773 = vmatpush.msra.mxu0 %v114
    %774 = vmatpush.msra.mxu0 %v112
    %775 = vmatmul.f32.gmra.mxu0 %v737
    %v776 = vpop.f32.mrf.mxu0
    %v777 = vadd.f32 0.0, %v776
    %778 = vdwg.mxu0
    %v779 = vadd.f32 %v667, %v757
    %v780 = vadd.f32 %v668, %v777
    %v781 = vmul.f32 %v779, 0.5
    %v782 = vmul.f32 %v780, 0.5
    %v783 = vtanh.pop %v781
    %v784 = vtanh.pop %v782
    %v785 = vmul.f32 %v783, 0.5
    %v786 = vmul.f32 %v784, 0.5
    %v787 = vadd.f32 %v785, 0.5
    %v788 = vadd.f32 %v786, 0.5
    %v789 = vtanh.pop %v780
    %v790 = vmul.f32 %v787, %v731
    %v791 = vmul.f32 %v787, %v789
    %793 = vrot.lane.b32.xlu0 %v791, 64
    %v794 = vpop.permute.xlu0 %793
    %v796 = vadd.f32 %v790, %v794
    %v797 = vtanh.pop %v796
    %v798 = vmul.f32 %v788, %v797
    %v799 = vld [vmem:[%s4] sm:$0xff]
    %v800 = vld [vmem:[%s4 + $0x8] sm:$0xff]
    %v801 = vld [vmem:[%s4 + $0x10] sm:$0xff]
    %v802 = vld [vmem:[%s4 + $0x18] sm:$0xff]
    %v803 = vld [vmem:[%s5] sm:$0x1]
    %v805 = vperm.slane %v803, 0
    %808 = vrot.lane.b32.xlu0 %v798, 32
    %v809 = vpop.permute.xlu0 %808
    %vm810 = vcmask 261120
    %v811 = vsel %vm810, %v809, 0
    %813 = vmatpush.msra.mxu0 0.0
    %814 = vmatpush.msra.mxu0 0.0
    %815 = vmatpush.msra.mxu0 0.0
    %816 = vmatpush.msra.mxu0 0.0
    %817 = vmatpush.msra.mxu0 0.0
    %818 = vmatpush.msra.mxu0 0.0
    %819 = vmatpush.msra.mxu0 0.0
    %820 = vmatpush.msra.mxu0 0.0
    %821 = vmatpush.msra.mxu0 0.0
    %822 = vmatpush.msra.mxu0 0.0
    %823 = vmatpush.msra.mxu0 0.0
    %824 = vmatpush.msra.mxu0 0.0
    %825 = vmatpush.msra.mxu0 %v802
    %826 = vmatpush.msra.mxu0 %v801
    %827 = vmatpush.msra.mxu0 %v800
    %828 = vmatpush.msra.mxu0 %v799
    %829 = vmatmul.f32.gmra.mxu0 %v811
    %v830 = vpop.f32.mrf.mxu0
    %v831 = vadd.f32 %v805, %v830
    %832 = vdwg.mxu0
    %vm833 = vcmask 25600
    %834 = vst.msk [vmem:[#allocation5] sm:$0x3] %vm833, %v831
    // Predicated region
    $region30: #{lstm_forecast_forward.1} parent=1 // pred_check
      _
    $region31: #{lstm_forecast_forward.1} parent=1 // pred_check_branch
      %836 = sbr.rel (0) target = $region33
    $region32: #{lstm_forecast_forward.1} parent=1 // pred_region
      %838 = vsyncadd [#allocation4], 0
      %s840 = sshll.u32 [#allocation5], 4
      %s841 = int_to_ptr.vmem [resolvable:$true] %s840
      %s842 = sshll.u32 %s6, 4
      %s843 = int_to_ptr.hbm [resolvable:$true] %s842
      %845 = dma.vmem_to_hbm [thread:$0]  %s841, 32, %s843, [#allocation4]
    $region33: #{lstm_forecast_forward.1} parent=1 // pred_fallthru
      _
    // Predicated region
    $region34: #{lstm_forecast_forward.1} parent=1 // pred_check
      _
    $region35: #{lstm_forecast_forward.1} parent=1 // pred_check_branch
      %847 = sbr.rel (0) target = $region37
    $region36: #{lstm_forecast_forward.1} parent=1 // pred_region
      %849 = dma.done [#allocation4], 32
    $region37: #{lstm_forecast_forward.1} parent=1 // pred_fallthru
      _
    %850 = vsyncpa [#allocation3], 1
    %851 = vsyncpa [#allocation4], 1

</llo_original>
